<compile_context>
chip_gen: v5e
topology: v5e:2x2
jax: 0.10.0
libtpu: 0.0.40
codegen_flags: <defaults>
</compile_context>

<pallas_src>
import functools

import jax
import jax.numpy as jnp
from jax.experimental import pallas as pl
from jax.experimental.pallas import tpu as pltpu


def _rup(v, m):
    return (v + m - 1) // m * m


def _conv1x1_kernel(x_ref, w_ref, b_ref, o_ref, *, use_mxu):
    # x_ref: (BN, c_in, TL)   w_ref: (c_out, c_in)   b_ref: (c_out, 1)
    # o_ref: (BN, c_out, TL)
    bn, c_in, tl = x_ref.shape
    c_out = o_ref.shape[1]

    w = w_ref[...]
    # Seed the accumulator with the bias (hoisted once per tile, reused for
    # every image plane in the block) instead of a trailing add pass.
    bias_tile = jnp.broadcast_to(b_ref[...].astype(jnp.float32), (c_out, tl))
    wf = w.astype(jnp.float32)

    for n in range(bn):                 # static unroll over images in the block
        x = x_ref[n]                    # (c_in, TL): plane slice, no relayout
        if use_mxu:
            acc = jnp.dot(w, x, preferred_element_type=jnp.float32) + bias_tile
        else:
            # Tiny contraction: unrolled VPU FMA chain (MXU would be <1%
            # utilized), accumulator pre-seeded with the bias.
            xf = x.astype(jnp.float32)
            acc = bias_tile
            for c in range(c_in):
                acc = acc + wf[:, c:c + 1] * xf[c:c + 1, :]
        o_ref[n] = acc.astype(o_ref.dtype)


# Soft budget for the double-buffered working set (portable to v7x's 64 MiB
# physical VMEM) and the hard cap we hand to the compiler.
_VMEM_BUDGET = 36 * 1024 * 1024
_VMEM_LIMIT_CAP = 48 * 1024 * 1024
_BN_CAP = 32          # bound kernel unroll / trace size for many tiny images


@functools.partial(jax.jit, static_argnames=("use_bf16_storage",))
def linear_conv1x1(x_nchw, weight, bias, *, use_bf16_storage=False):
    """1x1 Conv2d with bias (PyTorch `linear` module) via a Pallas kernel.

    x_nchw: (N, c_in, H, W)      weight: (c_out, c_in, 1, 1)      bias: (c_out,)
    returns (N, c_out, H, W) in x's dtype.
    """
    n, c_in, h, w = x_nchw.shape
    c_out = weight.shape[0]
    hw = h * w
    out_dtype = x_nchw.dtype

    # Free metadata reshape: NCHW is already channel-major.
    x_mat = x_nchw.reshape(n, c_in, hw)
    w_mat = weight[:, :, 0, 0]          # (c_out, c_in)
    b_col = bias.reshape(c_out, 1)

    if use_bf16_storage:
        # Optional ~2x input-traffic reduction (kernel accumulates in f32).
        x_mat = x_mat.astype(jnp.bfloat16)
        w_mat = w_mat.astype(jnp.bfloat16)
        b_col = b_col.astype(jnp.bfloat16)

    in_item = x_mat.dtype.itemsize
    out_item = jnp.dtype(out_dtype).itemsize

    # --- Channel-aware block budget ------------------------------------
    w_vmem = _rup(c_out, 8) * _rup(c_in, 128) * in_item
    b_vmem = _rup(c_out, 8) * 128 * in_item
    # Double-buffered in+out bytes per spatial column (sublane-padded).
    per_col = 2 * (_rup(c_in, 8) * in_item + _rup(c_out, 8) * out_item)
    avail = _VMEM_BUDGET - 2 * (w_vmem + b_vmem)
    cols_budget = max(128, avail // per_col) if avail > 0 else 128

    if hw <= cols_budget:
        # Full spatial extent per image -> one contiguous DMA per image,
        # span BN images per step.
        tl = hw
        bn = max(1, min(n, _BN_CAP, cols_budget // max(hw, 1)))
        if n >= 2:
            bn = min(bn, -(-n // 2))    # keep >= 2 parallel steps (v7x: 2 TCs)
        while n % bn != 0:              # exact batch blocking, no partial blocks
            bn -= 1
        grid = (n // bn, 1)
    else:
        # Lane-dense spatial tile; boundary block handled by Pallas masking
        # (no pad / slice round trip).
        tl = max(128, (cols_budget // 128) * 128)
        bn = 1
        grid = (n, pl.cdiv(hw, tl))

    # --- VPU vs MXU routing ---------------------------------------------
    # Contraction arithmetic intensity ~ c_in*c_out/(c_in+c_out); below the
    # VPU roofline ridge (~3 f32 flops/byte) keep it off the MXU.
    use_mxu = (c_in * c_out) / (c_in + c_out) > 3.0

    # --- VMEM limit derived from the actual double-buffered blocks -------
    in_blk = bn * _rup(c_in, 8) * _rup(tl, 128) * in_item
    out_blk = bn * _rup(c_out, 8) * _rup(tl, 128) * out_item
    vmem_need = 2 * (in_blk + out_blk + w_vmem + b_vmem) + (2 << 20)
    vmem_limit = int(min(max(vmem_need, 16 << 20), _VMEM_LIMIT_CAP))

    kernel = functools.partial(_conv1x1_kernel, use_mxu=use_mxu)

    out = pl.pallas_call(
        kernel,
        out_shape=jax.ShapeDtypeStruct((n, c_out, hw), out_dtype),
        grid_spec=pltpu.PrefetchScalarGridSpec(
            num_scalar_prefetch=0,
            grid=grid,
            in_specs=[
                pl.BlockSpec((bn, c_in, tl), lambda i, j: (i, 0, j)),
                pl.BlockSpec((c_out, c_in), lambda i, j: (0, 0)),
                pl.BlockSpec((c_out, 1), lambda i, j: (0, 0)),
            ],
            out_specs=pl.BlockSpec((bn, c_out, tl), lambda i, j: (i, 0, j)),
        ),
        compiler_params=pltpu.CompilerParams(
            dimension_semantics=("parallel", "parallel"),
            vmem_limit_bytes=vmem_limit,
        ),
        cost_estimate=pl.CostEstimate(
            flops=2 * n * hw * c_in * c_out,
            transcendentals=0,
            bytes_accessed=(n * c_in * hw + c_out * c_in + c_out) * in_item
            + n * c_out * hw * out_item,
        ),
    )(x_mat, w_mat, b_col)

    return out.reshape(n, c_out, h, w)


if __name__ == "__main__":
    key = jax.random.PRNGKey(0)
    k_x, k_w, k_b = jax.random.split(key, 3)

    N, C_IN, C_OUT, H, W = 2, 4, 8, 16, 16

    x = jax.random.normal(k_x, (N, C_IN, H, W), dtype=jnp.float32)
    # Deterministic synthetic params with Conv2d(c_in, c_out, 1) shapes.
    bound = 1.0 / (C_IN ** 0.5)  # mimic PyTorch default uniform bound
    weight = jax.random.uniform(
        k_w, (C_OUT, C_IN, 1, 1), minval=-bound, maxval=bound, dtype=jnp.float32
    )
    bias = jax.random.uniform(
        k_b, (C_OUT,), minval=-bound, maxval=bound, dtype=jnp.float32
    )

    out = linear_conv1x1(x, weight, bias)
    jax.block_until_ready(out)

    # Sanity check against a plain-JAX reference of the 1x1 conv.
    ref = jnp.einsum("nchw,oc->nohw", x, weight[:, :, 0, 0]) + bias[None, :, None, None]
    assert out.shape == (N, C_OUT, H, W)
    assert jnp.allclose(out, ref, atol=1e-5, rtol=1e-5)

    print("KERNEL_OK")
</pallas_src>

<mosaic_0001>
module attributes {stable_mosaic.version = 11 : i64} {
  func.func @_conv1x1_kernel(%arg0: i32, %arg1: i32, %arg2: memref<1x4x256xf32, #tpu.memory_space<vmem>>, %arg3: memref<8x4xf32, #tpu.memory_space<vmem>>, %arg4: memref<8x1xf32, #tpu.memory_space<vmem>>, %arg5: memref<1x8x256xf32, #tpu.memory_space<vmem>>) attributes {dimension_semantics = [#tpu.dimension_semantics<parallel>, #tpu.dimension_semantics<parallel>], iteration_bounds = array<i64: 2, 1>, scalar_prefetch = 0 : i64, scratch_operands = 0 : i64, tpu.core_type = #tpu.core_type<tc>, window_params = [{transform_indices = @transform_0, window_bounds = array<i64: 1, 4, 256>}, {pipeline_mode = #tpu.pipeline_mode<synchronous>, transform_indices = @transform_1, window_bounds = array<i64: 8, 4>}, {pipeline_mode = #tpu.pipeline_mode<synchronous>, transform_indices = @transform_2, window_bounds = array<i64: 8, 1>}, {transform_indices = @transform_3, window_bounds = array<i64: 1, 8, 256>}]} {
    %c0 = arith.constant 0 : index
    %c0_0 = arith.constant 0 : index
    %0 = vector.load %arg3[%c0, %c0_0] : memref<8x4xf32, #tpu.memory_space<vmem>>, vector<8x4xf32>
    %c0_1 = arith.constant 0 : index
    %c0_2 = arith.constant 0 : index
    %1 = vector.load %arg4[%c0_1, %c0_2] : memref<8x1xf32, #tpu.memory_space<vmem>>, vector<8x1xf32>
    %2 = vector.shape_cast %1 : vector<8x1xf32> to vector<8x1xf32>
    %3 = vector.broadcast %2 : vector<8x1xf32> to vector<8x256xf32>
    %c0_3 = arith.constant 0 : index
    %c0_4 = arith.constant 0 : index
    %c0_5 = arith.constant 0 : index
    %4 = vector.load %arg2[%c0_3, %c0_4, %c0_5] : memref<1x4x256xf32, #tpu.memory_space<vmem>>, vector<1x4x256xf32>
    %5 = vector.shape_cast %4 : vector<1x4x256xf32> to vector<4x256xf32>
    %6 = vector.extract_strided_slice %0 {offsets = [0, 0], sizes = [8, 1], strides = [1, 1]} : vector<8x4xf32> to vector<8x1xf32>
    %7 = vector.extract_strided_slice %5 {offsets = [0, 0], sizes = [1, 256], strides = [1, 1]} : vector<4x256xf32> to vector<1x256xf32>
    %8 = vector.broadcast %6 : vector<8x1xf32> to vector<8x256xf32>
    %9 = vector.broadcast %7 : vector<1x256xf32> to vector<8x256xf32>
    %10 = arith.mulf %8, %9 : vector<8x256xf32>
    %11 = arith.addf %3, %10 : vector<8x256xf32>
    %12 = vector.extract_strided_slice %0 {offsets = [0, 1], sizes = [8, 1], strides = [1, 1]} : vector<8x4xf32> to vector<8x1xf32>
    %13 = vector.extract_strided_slice %5 {offsets = [1, 0], sizes = [1, 256], strides = [1, 1]} : vector<4x256xf32> to vector<1x256xf32>
    %14 = vector.broadcast %12 : vector<8x1xf32> to vector<8x256xf32>
    %15 = vector.broadcast %13 : vector<1x256xf32> to vector<8x256xf32>
    %16 = arith.mulf %14, %15 : vector<8x256xf32>
    %17 = arith.addf %11, %16 : vector<8x256xf32>
    %18 = vector.extract_strided_slice %0 {offsets = [0, 2], sizes = [8, 1], strides = [1, 1]} : vector<8x4xf32> to vector<8x1xf32>
    %19 = vector.extract_strided_slice %5 {offsets = [2, 0], sizes = [1, 256], strides = [1, 1]} : vector<4x256xf32> to vector<1x256xf32>
    %20 = vector.broadcast %18 : vector<8x1xf32> to vector<8x256xf32>
    %21 = vector.broadcast %19 : vector<1x256xf32> to vector<8x256xf32>
    %22 = arith.mulf %20, %21 : vector<8x256xf32>
    %23 = arith.addf %17, %22 : vector<8x256xf32>
    %24 = vector.extract_strided_slice %0 {offsets = [0, 3], sizes = [8, 1], strides = [1, 1]} : vector<8x4xf32> to vector<8x1xf32>
    %25 = vector.extract_strided_slice %5 {offsets = [3, 0], sizes = [1, 256], strides = [1, 1]} : vector<4x256xf32> to vector<1x256xf32>
    %26 = vector.broadcast %24 : vector<8x1xf32> to vector<8x256xf32>
    %27 = vector.broadcast %25 : vector<1x256xf32> to vector<8x256xf32>
    %28 = arith.mulf %26, %27 : vector<8x256xf32>
    %29 = arith.addf %23, %28 : vector<8x256xf32>
    %c0_6 = arith.constant 0 : index
    %c0_7 = arith.constant 0 : index
    %c0_8 = arith.constant 0 : index
    %30 = vector.load %arg5[%c0_6, %c0_7, %c0_8] : memref<1x8x256xf32, #tpu.memory_space<vmem>>, vector<1x8x256xf32>
    %31 = vector.shape_cast %30 : vector<1x8x256xf32> to vector<8x256xf32>
    %32 = vector.shape_cast %29 : vector<8x256xf32> to vector<1x8x256xf32>
    tpu.vector_store %arg5[%c0_6, %c0_7, %c0_8], %32 {strides = array<i32>} : memref<1x8x256xf32, #tpu.memory_space<vmem>>, vector<1x8x256xf32>,
    return
  }
  func.func @transform_0(%arg0: i32, %arg1: i32) -> (i32, i32, i32) {
    %c0_i32 = arith.constant 0 : i32
    %c0_i32_0 = arith.constant 0 : i32
    return %arg0, %c0_i32, %arg1 : i32, i32, i32
  }
  func.func @transform_1(%arg0: i32, %arg1: i32) -> (i32, i32) {
    %c0_i32 = arith.constant 0 : i32
    %c0_i32_0 = arith.constant 0 : i32
    %c0_i32_1 = arith.constant 0 : i32
    return %c0_i32, %c0_i32_0 : i32, i32
  }
  func.func @transform_2(%arg0: i32, %arg1: i32) -> (i32, i32) {
    %c0_i32 = arith.constant 0 : i32
    %c0_i32_0 = arith.constant 0 : i32
    %c0_i32_1 = arith.constant 0 : i32
    return %c0_i32, %c0_i32_0 : i32, i32
  }
  func.func @transform_3(%arg0: i32, %arg1: i32) -> (i32, i32, i32) {
    %c0_i32 = arith.constant 0 : i32
    %c0_i32_0 = arith.constant 0 : i32
    return %arg0, %c0_i32, %arg1 : i32, i32, i32
  }
}

</mosaic_0001>

<llo_original>
// kernel: linear_conv1x1.1
$region0: #{linear_conv1x1.1}
  #allocation0 [shape = 'u32[]', space=smem, size = 0x4, offset = 0x4, fixed_abs, tag = 'smem constant byte address 0x4 - core index']
  #allocation1 [shape = 'u32[72,128]{1,0:T(1,128)}', space=vmem, size = 0x9000, scoped, tag = 'internal scratch']
  %s0 = inlined_call_operand.vmem [shape: f32[2,4,256], index: 0, kind: input, shape index: {}]
  %s1 = inlined_call_operand.vmem [shape: f32[8,4], index: 1, kind: input, shape index: {}]
  %s2 = inlined_call_operand.vmem [shape: f32[8,1], index: 2, kind: input, shape index: {}]
  %s3 = inlined_call_operand.vmem [shape: f32[2,8,256], index: 3, kind: output, shape index: {}]
  %s4 = sld [smem:[#allocation0]]
  $region45: #{linear_conv1x1.1} parent=0
    _
  %s6 = ssub.s32 1, %s4
  %s7 = scalar_select 0, %s6, %s4
  loop: start=0, step=1, limit=4
  $region2: #{linear_conv1x1.1} parent=0 // loop_pre_header
    _
  $region3: #{linear_conv1x1.1} parent=0 // loop_header
    %s9 = sphi 0, %s13
    %p10 = scmp.ge.s32.totalorder %s9, 4
    %s16 = sphi 0, %s28
    %s17 = sphi 0, %s24
    %s18 = sphi 0, %s16
    %s19 = sphi 0, %s17
    %s20 = sphi 0, %s18
    %s21 = sphi 0, %s19
    %s33 = sphi 0, %s35
    %s36 = sphi 0, %s33
    %s37 = sphi 0, %s36
    %s53 = sphi 0, %s37
    %s57 = sphi 0, %s57
    %s59 = sphi 0, %s57
    %s60 = sphi 0, %s59
    %s74 = sphi 0, %s60
    %s78 = sphi 0, %s78
    %s80 = sphi 0, %s78
    %s81 = sphi 0, %s80
    %s95 = sphi 0, %s81
    %s103 = sphi 0, %s105
    %s106 = sphi 0, %s103
    %s107 = sphi 0, %s106
    %s123 = sphi 0, %s107
  $region4: #{linear_conv1x1.1} parent=0 // loop_header_branch
    %12 = sbr.rel (%p10) target = $region8
  $region5: #{linear_conv1x1.1} parent=0 // loop_body
    %s14 = ssub.s32 %s9, 1
    %s15 = ssub.s32 %s9, 2
    %s22 = sadd.s32 1, %s17
    %p23 = scmp.ge.s32.totalorder %s22, 1
    %s24 = scalar_select %p23, 0, %s22
    %s25 = sadd.s32 1, %s16
    %s26 = scalar_select %p23, %s25, %s16
    %p27 = scmp.ge.s32.totalorder %s26, 2
    %s28 = scalar_select %p27, 0, %s26
    %s29 = ssub.s32 %s16, %s28
    %s30 = ssub.s32 %s17, %s24
    %s31 = sor.u32 %s29, %s30
    %p32 = scmp.eq.s32.totalorder %s31, 0
    %s34 = sadd.s32 %s33, 1
    %s35 = scalar_select %p32, %s33, %s34
    %p38 = pneg %p32
    %p39 = scmp.eq.s32.totalorder %s9, 1
    %p40 = por %p38, %p39
    %p41 = scmp.ne.s32.totalorder %s33, %s36
    %p42 = scmp.eq.s32.totalorder %s9, 0
    %p43 = por %p41, %p42
    %p44 = scmp.ne.s32.totalorder %s33, %s36
    %p45 = scmp.eq.s32.totalorder %s14, 1
    %p46 = por %p44, %p45
    %p47 = scmp.ne.s32.totalorder %s36, %s37
    %p48 = scmp.eq.s32.totalorder %s14, 0
    %p49 = por %p47, %p48
    %p50 = scmp.ne.s32.totalorder %s36, %s37
    %p51 = scmp.eq.s32.totalorder %s15, 1
    %p52 = por %p50, %p51
    %p54 = scmp.ne.s32.totalorder %s37, %s53
    %p55 = scmp.eq.s32.totalorder %s15, 0
    %p56 = por %p54, %p55
    %s58 = sadd.s32 %s57, 1
    %p61 = scmp.eq.s32.totalorder %s9, 1
    %p62 = scmp.ne.s32.totalorder %s57, %s59
    %p63 = scmp.eq.s32.totalorder %s9, 0
    %p64 = por %p62, %p63
    %p65 = scmp.ne.s32.totalorder %s57, %s59
    %p66 = scmp.eq.s32.totalorder %s14, 1
    %p67 = por %p65, %p66
    %p68 = scmp.ne.s32.totalorder %s59, %s60
    %p69 = scmp.eq.s32.totalorder %s14, 0
    %p70 = por %p68, %p69
    %p71 = scmp.ne.s32.totalorder %s59, %s60
    %p72 = scmp.eq.s32.totalorder %s15, 1
    %p73 = por %p71, %p72
    %p75 = scmp.ne.s32.totalorder %s60, %s74
    %p76 = scmp.eq.s32.totalorder %s15, 0
    %p77 = por %p75, %p76
    %s79 = sadd.s32 %s78, 1
    %p82 = scmp.eq.s32.totalorder %s9, 1
    %p83 = scmp.ne.s32.totalorder %s78, %s80
    %p84 = scmp.eq.s32.totalorder %s9, 0
    %p85 = por %p83, %p84
    %p86 = scmp.ne.s32.totalorder %s78, %s80
    %p87 = scmp.eq.s32.totalorder %s14, 1
    %p88 = por %p86, %p87
    %p89 = scmp.ne.s32.totalorder %s80, %s81
    %p90 = scmp.eq.s32.totalorder %s14, 0
    %p91 = por %p89, %p90
    %p92 = scmp.ne.s32.totalorder %s80, %s81
    %p93 = scmp.eq.s32.totalorder %s15, 1
    %p94 = por %p92, %p93
    %p96 = scmp.ne.s32.totalorder %s81, %s95
    %p97 = scmp.eq.s32.totalorder %s15, 0
    %p98 = por %p96, %p97
    %s99 = ssub.s32 %s16, %s28
    %s100 = ssub.s32 %s17, %s24
    %s101 = sor.u32 %s99, %s100
    %p102 = scmp.eq.s32.totalorder %s101, 0
    %s104 = sadd.s32 %s103, 1
    %s105 = scalar_select %p102, %s103, %s104
    %p108 = pneg %p102
    %p109 = scmp.eq.s32.totalorder %s9, 1
    %p110 = por %p108, %p109
    %p111 = scmp.ne.s32.totalorder %s103, %s106
    %p112 = scmp.eq.s32.totalorder %s9, 0
    %p113 = por %p111, %p112
    %p114 = scmp.ne.s32.totalorder %s103, %s106
    %p115 = scmp.eq.s32.totalorder %s14, 1
    %p116 = por %p114, %p115
    %p117 = scmp.ne.s32.totalorder %s106, %s107
    %p118 = scmp.eq.s32.totalorder %s14, 0
    %p119 = por %p117, %p118
    %p120 = scmp.ne.s32.totalorder %s106, %s107
    %p121 = scmp.eq.s32.totalorder %s15, 1
    %p122 = por %p120, %p121
    %p124 = scmp.ne.s32.totalorder %s107, %s123
    %p125 = scmp.eq.s32.totalorder %s15, 0
    %p126 = por %p124, %p125
    %p127 = scmp.le.s32.totalorder 1, %s9
    %p128 = scmp.lt.s32.totalorder %s9, 3
    %p129 = pnand %p127, %p128
    %p130 = pneg %p129
    // Predicated region
    $region9: #{linear_conv1x1.1} parent=5 // pred_check
      _
    $region10: #{linear_conv1x1.1} parent=5 // pred_check_branch
      %132 = sbr.rel (%p129) target = $region12
    $region11: #{linear_conv1x1.1} parent=5 // pred_region
      %s133 = ssub.s32 %s9, 1
      // Predicated region
      $region13: #{linear_conv1x1.1} parent=11 // pred_check
        %p134 = pneg %p70
      $region14: #{linear_conv1x1.1} parent=11 // pred_check_branch
        %136 = sbr.rel (%p134) target = $region16
      $region15: #{linear_conv1x1.1} parent=11 // pred_region
        _
      $region16: #{linear_conv1x1.1} parent=11 // pred_fallthru
        _
      // Predicated region
      $region17: #{linear_conv1x1.1} parent=11 // pred_check
        %p137 = pneg %p91
      $region18: #{linear_conv1x1.1} parent=11 // pred_check_branch
        %139 = sbr.rel (%p137) target = $region20
      $region19: #{linear_conv1x1.1} parent=11 // pred_region
        _
      $region20: #{linear_conv1x1.1} parent=11 // pred_fallthru
        _
    $region12: #{linear_conv1x1.1} parent=5 // pred_fallthru
      _
    %p140 = scmp.lt.s32.totalorder %s9, 2
    // Predicated region
    $region21: #{linear_conv1x1.1} parent=5 // pred_check
      %p141 = pneg %p140
    $region22: #{linear_conv1x1.1} parent=5 // pred_check_branch
      %143 = sbr.rel (%p141) target = $region24
    $region23: #{linear_conv1x1.1} parent=5 // pred_region
      // Predicated region
      $region25: #{linear_conv1x1.1} parent=23 // pred_check
        %p144 = pneg %p43
      $region26: #{linear_conv1x1.1} parent=23 // pred_check_branch
        %146 = sbr.rel (%p144) target = $region28
      $region27: #{linear_conv1x1.1} parent=23 // pred_region
        %s147 = smul.u32 2, %s17
        %p148 = scmp.lt.s32.totalorder %s16, 1
        %s149 = scalar_select %p148, %s16, 1
        %p150 = scmp.lt.s32.totalorder %s147, 1
        %s151 = scalar_select %p150, %s147, 1
        %s152 = smul.addr %s149, 2
        %s153 = sadd.s32 %s151, %s152
        %s154 = smul.addr %s153, 4
        %s155 = scalar_lea.vmem %s0, %s154
        %s156 = smul.u32 2, %s17
      $region28: #{linear_conv1x1.1} parent=23 // pred_fallthru
        _
    $region24: #{linear_conv1x1.1} parent=5 // pred_fallthru
      _
    %p157 = scmp.le.s32.totalorder 1, %s9
    %p158 = scmp.lt.s32.totalorder %s9, 3
    %p159 = pnand %p157, %p158
    %p160 = pneg %p159
    // Predicated region
    $region29: #{linear_conv1x1.1} parent=5 // pred_check
      _
    $region30: #{linear_conv1x1.1} parent=5 // pred_check_branch
      %162 = sbr.rel (%p159) target = $region32
    $region31: #{linear_conv1x1.1} parent=5 // pred_region
      %s163 = ssub.s32 %s9, 1
      %s164 = smul.u32 2, %s19
      %p165 = scmp.lt.s32.totalorder %s18, 1
      %s166 = scalar_select %p165, %s18, 1
      %p167 = scmp.lt.s32.totalorder %s164, 1
      %s168 = scalar_select %p167, %s164, 1
      %s169 = smul.addr %s166, 2
      %s170 = sadd.s32 %s168, %s169
      %s171 = smul.addr %s170, 4
      %s172 = scalar_lea.vmem %s0, %s171
      %p173 = pneg %p49
      %p174 = pneg %p46
      %p175 = pneg %p70
      %p176 = pneg %p67
      %p177 = pneg %p91
      %p178 = pneg %p88
      %p179 = pneg %p119
      %p180 = pneg %p116
      %s181 = smul.u32 2, %s19
      %p182 = scmp.lt.s32.totalorder %s18, 1
      %s183 = scalar_select %p182, %s18, 1
      %p184 = scmp.lt.s32.totalorder %s181, 1
      %s185 = scalar_select %p184, %s181, 1
      %s186 = smul.addr %s183, 2
      %s187 = sadd.s32 %s185, %s186
      %s188 = smul.addr %s187, 8
      %s189 = scalar_lea.vmem %s3, %s188
      %s190 = smul.u32 2, %s19
      %p191 = scmp.lt.s32.totalorder %s18, 1
      %s192 = scalar_select %p191, %s18, 1
      %p193 = scmp.lt.s32.totalorder %s190, 1
      %s194 = scalar_select %p193, %s190, 1
      %s195 = smul.addr %s192, 2
      %s196 = sadd.s32 %s194, %s195
      %s197 = smul.addr %s196, 4
      %s198 = scalar_lea.vmem %s0, %s197
      %s199 = smul.u32 2, %s19
      %s200 = smul.u32 2, %s19
      %p201 = scmp.lt.s32.totalorder %s18, 1
      %s202 = scalar_select %p201, %s18, 1
      %p203 = scmp.lt.s32.totalorder %s200, 1
      %s204 = scalar_select %p203, %s200, 1
      %s205 = smul.addr %s202, 2
      %s206 = sadd.s32 %s204, %s205
      %s207 = smul.addr %s206, 8
      %s208 = scalar_lea.vmem %s3, %s207
      %s209 = smul.u32 2, %s19
      %v210 = vld [vmem:[%s1] sm:$0xff]
      %v211 = vld [vmem:[%s2] sm:$0xff]
      %213 = vset.pattern.permute.xlu0 0
      %214 = vperm.xlu0 %213, %v211
      %v215 = vpop.permute.xlu0 %214
      %v217 = vld [vmem:[%s198] sm:$0xff]
      %219 = vset.pattern.permute.xlu0 0
      %220 = vperm.xlu0 %219, %v210
      %v221 = vpop.permute.xlu0 %220
      %v224 = vperm.slane %v217, 0
      %v225 = vperm.slane %v217, 4
      %v228 = vperm.slane %v224, 0
      %v229 = vperm.slane %v225, 0
      %v230 = vmul.f32 %v221, %v228
      %v231 = vmul.f32 %v221, %v229
      %v232 = vadd.f32 %v215, %v230
      %v233 = vadd.f32 %v215, %v231
      %234 = vset.pattern.permute.xlu0 1
      %235 = vperm.xlu0 %234, %v210
      %v236 = vpop.permute.xlu0 %235
      %v238 = vperm.slane %v217, 1
      %v239 = vperm.slane %v217, 5
      %v242 = vperm.slane %v238, 1
      %v243 = vperm.slane %v239, 1
      %v244 = vmul.f32 %v236, %v242
      %v245 = vmul.f32 %v236, %v243
      %v246 = vadd.f32 %v232, %v244
      %v247 = vadd.f32 %v233, %v245
      %248 = vset.pattern.permute.xlu0 2
      %249 = vperm.xlu0 %248, %v210
      %v250 = vpop.permute.xlu0 %249
      %v252 = vperm.slane %v217, 2
      %v253 = vperm.slane %v217, 6
      %v256 = vperm.slane %v252, 2
      %v257 = vperm.slane %v253, 2
      %v258 = vmul.f32 %v250, %v256
      %v259 = vmul.f32 %v250, %v257
      %v260 = vadd.f32 %v246, %v258
      %v261 = vadd.f32 %v247, %v259
      %262 = vset.pattern.permute.xlu0 3
      %263 = vperm.xlu0 %262, %v210
      %v264 = vpop.permute.xlu0 %263
      %v266 = vperm.slane %v217, 3
      %v267 = vperm.slane %v217, 7
      %v270 = vperm.slane %v266, 3
      %v271 = vperm.slane %v267, 3
      %v272 = vmul.f32 %v264, %v270
      %v273 = vmul.f32 %v264, %v271
      %v274 = vadd.f32 %v260, %v272
      %v275 = vadd.f32 %v261, %v273
      %276 = vst [vmem:[%s208] sm:$0xff] %v274
      %277 = vst [vmem:[%s208 + $0x8] sm:$0xff] %v275
      %s278 = smul.u32 2, %s19
      %p279 = scmp.lt.s32.totalorder %s18, 1
      %s280 = scalar_select %p279, %s18, 1
      %p281 = scmp.lt.s32.totalorder %s278, 1
      %s282 = scalar_select %p281, %s278, 1
      %s283 = smul.addr %s280, 2
      %s284 = sadd.s32 %s282, %s283
      %s285 = smul.addr %s284, 8
      %s286 = scalar_lea.vmem %s3, %s285
      // Predicated region
      $region33: #{linear_conv1x1.1} parent=31 // pred_check
        %p287 = pneg %p116
      $region34: #{linear_conv1x1.1} parent=31 // pred_check_branch
        %289 = sbr.rel (%p287) target = $region36
      $region35: #{linear_conv1x1.1} parent=31 // pred_region
        %s290 = smul.u32 2, %s19
      $region36: #{linear_conv1x1.1} parent=31 // pred_fallthru
        _
    $region32: #{linear_conv1x1.1} parent=5 // pred_fallthru
      _
    %p291 = scmp.le.s32.totalorder 2, %s9
    // Predicated region
    $region37: #{linear_conv1x1.1} parent=5 // pred_check
      %p292 = pneg %p291
    $region38: #{linear_conv1x1.1} parent=5 // pred_check_branch
      %294 = sbr.rel (%p292) target = $region40
    $region39: #{linear_conv1x1.1} parent=5 // pred_region
      %s295 = ssub.s32 %s9, 2
      // Predicated region
      $region41: #{linear_conv1x1.1} parent=39 // pred_check
        %p296 = pneg %p122
      $region42: #{linear_conv1x1.1} parent=39 // pred_check_branch
        %298 = sbr.rel (%p296) target = $region44
      $region43: #{linear_conv1x1.1} parent=39 // pred_region
        %s299 = smul.u32 2, %s21
        %p300 = scmp.lt.s32.totalorder %s20, 1
        %s301 = scalar_select %p300, %s20, 1
        %p302 = scmp.lt.s32.totalorder %s299, 1
        %s303 = scalar_select %p302, %s299, 1
        %s304 = smul.addr %s301, 2
        %s305 = sadd.s32 %s303, %s304
        %s306 = smul.addr %s305, 8
        %s307 = scalar_lea.vmem %s3, %s306
      $region44: #{linear_conv1x1.1} parent=39 // pred_fallthru
        _
    $region40: #{linear_conv1x1.1} parent=5 // pred_fallthru
      _
  $region6: #{linear_conv1x1.1} parent=0 // loop_footer
    %s13 = sadd.s32 1, %s9
  $region7: #{linear_conv1x1.1} parent=0 // loop_footer_branch
    %8 = sbr.rel target = $region3
  $region8: #{linear_conv1x1.1} parent=0 // loop_exit
    _

</llo_original>
